<compile_context>
chip_gen: v7x
topology: tpu7x:2x2x1
jax: 0.10.0
libtpu: 0.0.40
codegen_flags: <defaults>
</compile_context>

<pallas_src>
import functools
import math

import jax
import jax.numpy as jnp
from jax.experimental import pallas as pl
from jax.experimental.pallas import tpu as pltpu

LANE = 128
SUBLANE = 8


def _round_up(x, m):
    return (x + m - 1) // m * m


def mlp_kernel(x_ref, w1_ref, b1_ref, w2_ref, b2_ref, o_ref):
    # x arrives as f32 from HBM; cast to weight dtype on the VPU (free slot)
    # right before feeding the MXU.  Accumulate in f32.
    x = x_ref[...].astype(w1_ref.dtype)
    h = jnp.dot(x, w1_ref[...], preferred_element_type=jnp.float32)
    # Bias add + ReLU on the VPU in f32 (no bf16 VPU on v5e).
    h = jnp.maximum(h + b1_ref[...], 0.0)
    out = jnp.dot(h.astype(w2_ref.dtype), w2_ref[...],
                  preferred_element_type=jnp.float32)
    # Narrow (bm, ACTION_NUM) f32 store: sub-128-lane masked stores, but the
    # kernel is HBM-bound, not store-slot-bound, so fewer bytes win.
    o_ref[...] = (out + b2_ref[...]).astype(o_ref.dtype)


def init_params(key, state_num, action_num, hidden=20):
    """Deterministic init mimicking PyTorch nn.Linear defaults.
    Weights stored as (in, out), i.e. transposed vs PyTorch's (out, in)."""
    k1, k2, k3, k4 = jax.random.split(key, 4)
    bound1 = 1.0 / jnp.sqrt(jnp.float32(state_num))
    bound2 = 1.0 / jnp.sqrt(jnp.float32(hidden))
    w1 = jax.random.uniform(k1, (state_num, hidden), jnp.float32, -bound1, bound1)
    b1 = jax.random.uniform(k2, (1, hidden), jnp.float32, -bound1, bound1)
    w2 = jax.random.uniform(k3, (hidden, action_num), jnp.float32, -bound2, bound2)
    b2 = jax.random.uniform(k4, (1, action_num), jnp.float32, -bound2, bound2)
    return w1, b1, w2, b2


def prepare_params(w1, b1, w2, b2, *, use_bf16=True):
    """One-time padding/casting of parameters (resident in VMEM during the kernel).

    w1: (S, H) -> (S, H_pad)   bf16 (or f32)
    b1: (1, H) -> (1, H_pad)   f32
    w2: (H, A) -> (H_pad, A)   bf16 (or f32)   (NO A padding -> narrow output)
    b2: (1, A) -> (1, A)       f32
    Zero padding of the hidden dim is numerically inert through ReLU / zero
    rows of w2.
    """
    S, H = w1.shape
    _, A = w2.shape
    H_pad = _round_up(H, LANE)
    wdt = jnp.bfloat16 if use_bf16 else jnp.float32

    w1_p = jnp.zeros((S, H_pad), wdt).at[:, :H].set(w1.astype(wdt))
    b1_p = jnp.zeros((1, H_pad), jnp.float32).at[:, :H].set(b1.astype(jnp.float32))
    w2_p = jnp.zeros((H_pad, A), wdt).at[:H, :].set(w2.astype(wdt))
    b2_p = b2.astype(jnp.float32).reshape(1, A)
    return {"w1": w1_p, "b1": b1_p, "w2": w2_p, "b2": b2_p,
            "hidden": H, "actions": A}


def _choose_bm(B, block_m):
    """Pick a batch tile that (a) fits block_m, (b) minimizes B_pad overshoot,
    and (c) gives >=2 grid steps on mid/large batches (v7x has 2 TCs)."""
    n_tiles = max(1, math.ceil(B / block_m))
    if B >= 2048:
        n_tiles = max(n_tiles, 2)
    return _round_up(math.ceil(B / n_tiles), SUBLANE)


@functools.partial(jax.jit, static_argnames=("bm",))
def _net_forward_pallas(x, w1, b1, w2, b2, *, bm):
    B, S = x.shape
    H_pad = w1.shape[1]
    A = w2.shape[1]

    B_pad = _round_up(B, bm)
    x_p = x if B_pad == B else jnp.pad(x, ((0, B_pad - B), (0, 0)))
    grid = (B_pad // bm,)

    flops = 2 * B_pad * (S * H_pad + H_pad * A)
    bytes_accessed = (
        B_pad * S * x.dtype.itemsize                         # x in (f32)
        + w1.size * w1.dtype.itemsize + w2.size * w2.dtype.itemsize
        + b1.size * b1.dtype.itemsize + b2.size * b2.dtype.itemsize
        + B_pad * A * 4)                                     # narrow f32 out

    out = pl.pallas_call(
        mlp_kernel,
        out_shape=jax.ShapeDtypeStruct((B_pad, A), jnp.float32),
        grid=grid,
        in_specs=[
            pl.BlockSpec((bm, S), lambda i: (i, 0)),          # x: streamed by batch tile
            pl.BlockSpec((S, H_pad), lambda i: (0, 0)),       # w1: resident
            pl.BlockSpec((1, H_pad), lambda i: (0, 0)),       # b1: resident
            pl.BlockSpec((H_pad, A), lambda i: (0, 0)),       # w2: resident
            pl.BlockSpec((1, A), lambda i: (0, 0)),           # b2: resident
        ],
        out_specs=pl.BlockSpec((bm, A), lambda i: (i, 0)),    # narrow output
        compiler_params=pltpu.CompilerParams(
            dimension_semantics=("parallel",),                # batch tiles independent
        ),
        cost_estimate=pl.CostEstimate(
            flops=flops, transcendentals=0, bytes_accessed=bytes_accessed),
    )(x_p, w1, b1, w2, b2)

    # Un-pad inside the jit so it fuses with the kernel's output handling
    # (padded rows compute relu(b1)@w2 + b2 and must never escape this fn).
    return out[:B] if B_pad != B else out


@jax.jit
def _net_forward_xla(x, w1, b1, w2, b2):
    # Small-batch fast path: plain XLA, same precision recipe as the kernel.
    h = jnp.maximum(
        jnp.dot(x.astype(w1.dtype), w1, preferred_element_type=jnp.float32) + b1,
        0.0)
    return jnp.dot(h.astype(w2.dtype), w2,
                   preferred_element_type=jnp.float32) + b2


def net_forward(x, params, *, block_m=4096, min_pallas_batch=512):
    """Forward pass of Net: relu(x @ W1 + b1) @ W2 + b2 -> (B, ACTION_NUM) f32."""
    x = x.astype(jnp.float32)
    B = x.shape[0]
    w1, b1, w2, b2 = params["w1"], params["b1"], params["w2"], params["b2"]
    if B < min_pallas_batch:
        return _net_forward_xla(x, w1, b1, w2, b2)
    bm = _choose_bm(B, block_m)
    return _net_forward_pallas(x, w1, b1, w2, b2, bm=bm)


def _reference(x, w1, b1, w2, b2, use_bf16=True):
    """Pure-JAX reference mimicking the kernel's precision path."""
    wdt = jnp.bfloat16 if use_bf16 else jnp.float32
    xb = x.astype(wdt).astype(jnp.float32)
    w1b = w1.astype(wdt).astype(jnp.float32)
    w2b = w2.astype(wdt).astype(jnp.float32)
    h = jnp.maximum(xb @ w1b + b1, 0.0)
    return h.astype(wdt).astype(jnp.float32) @ w2b + b2


if __name__ == "__main__":
    STATE_NUM = 16
    ACTION_NUM = 4
    BATCH = 8

    key = jax.random.PRNGKey(0)
    kx, kx2, kp = jax.random.split(key, 3)
    w1, b1, w2, b2 = init_params(kp, STATE_NUM, ACTION_NUM)
    params = prepare_params(w1, b1, w2, b2, use_bf16=True)

    # Case 1: tiny batch, single grid step (force the Pallas path in the demo).
    x = jax.random.normal(kx, (BATCH, STATE_NUM), jnp.float32)
    out = jax.block_until_ready(net_forward(x, params, min_pallas_batch=1))
    ref = _reference(x, w1, b1, w2, b2)
    assert out.shape == (BATCH, ACTION_NUM), out.shape
    assert jnp.allclose(out, ref, atol=1e-3, rtol=1e-3), jnp.max(jnp.abs(out - ref))

    # Case 2: multi-tile grid with batch padding + in-jit un-pad slice.
    B2 = 40
    x2 = jax.random.normal(kx2, (B2, STATE_NUM), jnp.float32)
    out2 = jax.block_until_ready(
        net_forward(x2, params, block_m=16, min_pallas_batch=1))
    ref2 = _reference(x2, w1, b1, w2, b2)
    assert out2.shape == (B2, ACTION_NUM), out2.shape
    assert jnp.allclose(out2, ref2, atol=1e-3, rtol=1e-3), jnp.max(jnp.abs(out2 - ref2))

    print("KERNEL_OK")
</pallas_src>

<mosaic_0001>
module attributes {stable_mosaic.version = 11 : i64} {
  func.func @mlp_kernel(%arg0: i32, %arg1: memref<8x16xf32, #tpu.memory_space<vmem>>, %arg2: memref<16x128xbf16, #tpu.memory_space<vmem>>, %arg3: memref<1x128xf32, #tpu.memory_space<vmem>>, %arg4: memref<128x4xbf16, #tpu.memory_space<vmem>>, %arg5: memref<1x4xf32, #tpu.memory_space<vmem>>, %arg6: memref<8x4xf32, #tpu.memory_space<vmem>>) attributes {dimension_semantics = [#tpu.dimension_semantics<parallel>], iteration_bounds = array<i64: 1>, scalar_prefetch = 0 : i64, scratch_operands = 0 : i64, tpu.core_type = #tpu.core_type<tc>, window_params = [{transform_indices = @transform_0, window_bounds = array<i64: 8, 16>}, {pipeline_mode = #tpu.pipeline_mode<synchronous>, transform_indices = @transform_1, window_bounds = array<i64: 16, 128>}, {pipeline_mode = #tpu.pipeline_mode<synchronous>, transform_indices = @transform_2, window_bounds = array<i64: 1, 128>}, {pipeline_mode = #tpu.pipeline_mode<synchronous>, transform_indices = @transform_3, window_bounds = array<i64: 128, 4>}, {pipeline_mode = #tpu.pipeline_mode<synchronous>, transform_indices = @transform_4, window_bounds = array<i64: 1, 4>}, {transform_indices = @transform_5, window_bounds = array<i64: 8, 4>}]} {
    %c0 = arith.constant 0 : index
    %c0_0 = arith.constant 0 : index
    %0 = vector.load %arg1[%c0, %c0_0] : memref<8x16xf32, #tpu.memory_space<vmem>>, vector<8x16xf32>
    %1 = arith.truncf %0 : vector<8x16xf32> to vector<8x16xbf16>
    %c0_1 = arith.constant 0 : index
    %c0_2 = arith.constant 0 : index
    %2 = vector.load %arg2[%c0_1, %c0_2] : memref<16x128xbf16, #tpu.memory_space<vmem>>, vector<16x128xbf16>
    %cst = arith.constant dense<0.000000e+00> : vector<8x128xf32>
    %3 = tpu.matmul %1, %2, %cst {dimension_numbers = #tpu.dot_dimension_numbers<[1], [0], [0], [1], [0, 0, 1, 1], [], []>} : vector<8x16xbf16>, vector<16x128xbf16>, vector<8x128xf32> -> vector<8x128xf32>
    %c0_3 = arith.constant 0 : index
    %c0_4 = arith.constant 0 : index
    %4 = vector.load %arg3[%c0_3, %c0_4] : memref<1x128xf32, #tpu.memory_space<vmem>>, vector<1x128xf32>
    %5 = vector.broadcast %4 : vector<1x128xf32> to vector<8x128xf32>
    %6 = arith.addf %3, %5 : vector<8x128xf32>
    %cst_5 = arith.constant 0.000000e+00 : f32
    %7 = vector.broadcast %cst_5 : f32 to vector<8x128xf32>
    %8 = arith.maximumf %6, %7 : vector<8x128xf32>
    %9 = arith.truncf %8 : vector<8x128xf32> to vector<8x128xbf16>
    %c0_6 = arith.constant 0 : index
    %c0_7 = arith.constant 0 : index
    %10 = vector.load %arg4[%c0_6, %c0_7] : memref<128x4xbf16, #tpu.memory_space<vmem>>, vector<128x4xbf16>
    %cst_8 = arith.constant dense<0.000000e+00> : vector<8x4xf32>
    %11 = tpu.matmul %9, %10, %cst_8 {dimension_numbers = #tpu.dot_dimension_numbers<[1], [0], [0], [1], [0, 0, 1, 1], [], []>} : vector<8x128xbf16>, vector<128x4xbf16>, vector<8x4xf32> -> vector<8x4xf32>
    %c0_9 = arith.constant 0 : index
    %c0_10 = arith.constant 0 : index
    %12 = vector.load %arg5[%c0_9, %c0_10] : memref<1x4xf32, #tpu.memory_space<vmem>>, vector<1x4xf32>
    %13 = vector.broadcast %12 : vector<1x4xf32> to vector<8x4xf32>
    %14 = arith.addf %11, %13 : vector<8x4xf32>
    %c0_11 = arith.constant 0 : index
    %c0_12 = arith.constant 0 : index
    %15 = vector.load %arg6[%c0_11, %c0_12] : memref<8x4xf32, #tpu.memory_space<vmem>>, vector<8x4xf32>
    tpu.vector_store %arg6[%c0_11, %c0_12], %14 {strides = array<i32>} : memref<8x4xf32, #tpu.memory_space<vmem>>, vector<8x4xf32>,
    return
  }
  func.func @transform_0(%arg0: i32) -> (i32, i32) {
    %c0_i32 = arith.constant 0 : i32
    %c0_i32_0 = arith.constant 0 : i32
    return %arg0, %c0_i32 : i32, i32
  }
  func.func @transform_1(%arg0: i32) -> (i32, i32) {
    %c0_i32 = arith.constant 0 : i32
    %c0_i32_0 = arith.constant 0 : i32
    %c0_i32_1 = arith.constant 0 : i32
    return %c0_i32, %c0_i32_0 : i32, i32
  }
  func.func @transform_2(%arg0: i32) -> (i32, i32) {
    %c0_i32 = arith.constant 0 : i32
    %c0_i32_0 = arith.constant 0 : i32
    %c0_i32_1 = arith.constant 0 : i32
    return %c0_i32, %c0_i32_0 : i32, i32
  }
  func.func @transform_3(%arg0: i32) -> (i32, i32) {
    %c0_i32 = arith.constant 0 : i32
    %c0_i32_0 = arith.constant 0 : i32
    %c0_i32_1 = arith.constant 0 : i32
    return %c0_i32, %c0_i32_0 : i32, i32
  }
  func.func @transform_4(%arg0: i32) -> (i32, i32) {
    %c0_i32 = arith.constant 0 : i32
    %c0_i32_0 = arith.constant 0 : i32
    %c0_i32_1 = arith.constant 0 : i32
    return %c0_i32, %c0_i32_0 : i32, i32
  }
  func.func @transform_5(%arg0: i32) -> (i32, i32) {
    %c0_i32 = arith.constant 0 : i32
    %c0_i32_0 = arith.constant 0 : i32
    return %arg0, %c0_i32 : i32, i32
  }
}

</mosaic_0001>

<llo_original>
// kernel: _net_forward_pallas.1
$region0: #{_net_forward_pallas.1}
  #allocation0 [shape = 'u32[]', space=smem, size = 0x4, offset = 0x4, fixed_abs, tag = 'smem constant byte address 0x4 - core index']
  #allocation1 [shape = 'u32[144,128]{1,0:T(1,128)}', space=vmem, size = 0x12000, scoped, tag = 'internal scratch']
  %s0 = inlined_call_operand.vmem [shape: f32[8,16], index: 0, kind: input, shape index: {}]
  %s1 = inlined_call_operand.vmem [shape: bf16[16,128], index: 1, kind: input, shape index: {}]
  %s2 = inlined_call_operand.vmem [shape: f32[1,128], index: 2, kind: input, shape index: {}]
  %s3 = inlined_call_operand.vmem [shape: bf16[128,4], index: 3, kind: input, shape index: {}]
  %s4 = inlined_call_operand.vmem [shape: f32[1,4], index: 4, kind: input, shape index: {}]
  %s5 = inlined_call_operand.vmem [shape: f32[8,4], index: 5, kind: output, shape index: {}]
  %s6 = sld [smem:[#allocation0]]
  $region30: #{_net_forward_pallas.1} parent=0
    _
  %s8 = ssub.s32 1, %s6
  %s9 = scalar_select 0, %s8, %s6
  // Predicated region
  $region2: #{_net_forward_pallas.1} parent=0 // pred_check
    _
  $region3: #{_net_forward_pallas.1} parent=0 // pred_check_branch
    %11 = sbr.rel (0) target = $region5
  $region4: #{_net_forward_pallas.1} parent=0 // pred_region
    _
  $region5: #{_net_forward_pallas.1} parent=0 // pred_fallthru
    _
  // Predicated region
  $region6: #{_net_forward_pallas.1} parent=0 // pred_check
    _
  $region7: #{_net_forward_pallas.1} parent=0 // pred_check_branch
    %13 = sbr.rel (0) target = $region9
  $region8: #{_net_forward_pallas.1} parent=0 // pred_region
    _
  $region9: #{_net_forward_pallas.1} parent=0 // pred_fallthru
    _
  // Predicated region
  $region10: #{_net_forward_pallas.1} parent=0 // pred_check
    _
  $region11: #{_net_forward_pallas.1} parent=0 // pred_check_branch
    %15 = sbr.rel (0) target = $region13
  $region12: #{_net_forward_pallas.1} parent=0 // pred_region
    _
  $region13: #{_net_forward_pallas.1} parent=0 // pred_fallthru
    _
  // Predicated region
  $region14: #{_net_forward_pallas.1} parent=0 // pred_check
    _
  $region15: #{_net_forward_pallas.1} parent=0 // pred_check_branch
    %17 = sbr.rel (0) target = $region17
  $region16: #{_net_forward_pallas.1} parent=0 // pred_region
    _
  $region17: #{_net_forward_pallas.1} parent=0 // pred_fallthru
    _
  // Predicated region
  $region18: #{_net_forward_pallas.1} parent=0 // pred_check
    _
  $region19: #{_net_forward_pallas.1} parent=0 // pred_check_branch
    %19 = sbr.rel (0) target = $region21
  $region20: #{_net_forward_pallas.1} parent=0 // pred_region
    _
  $region21: #{_net_forward_pallas.1} parent=0 // pred_fallthru
    _
  %v21 = vld [vmem:[%s0] sm:$0xff]
  %v22 = vpack.c.bf16 %v21, %v21
  %v23 = vld [vmem:[%s1] sm:$0xf]
  %v24 = vld [vmem:[%s1 + $0x4] sm:$0xf]
  %v25 = vld [vmem:[%s2] sm:$0x1]
  %v27 = vlaneseq
  %v28 = vshrl.u32 %v27, 7
  %v29 = vsub.s32 0, %v28
  %v30 = vrot.slane %v25, %v29
  %v34 = vunpack.c.l.b16 %v23
  %v35 = vunpack.c.l.b16 %v24
  %v36 = vpack.c.b16 %v35, %v34
  %vm38 = vcmask 130048
  %v40 = vsel %vm38, %v22, 0
  %42 = vmatprep.subr.bf16.mxu0 0
  %43 = vmatpush1.bf16.msra.mxu0 %v36
  %44 = vmatprep.subr.bf16.mxu0 0
  %45 = vmatpush1.bf16.msra.mxu0 0
  %46 = vmatprep.subr.bf16.mxu0 0
  %47 = vmatpush1.bf16.msra.mxu0 0
  %48 = vmatprep.subr.bf16.mxu0 0
  %49 = vmatpush1.bf16.msra.mxu0 0
  %50 = vmatprep.subr.bf16.mxu0 0
  %51 = vmatpush1.bf16.msra.mxu0 0
  %52 = vmatprep.subr.bf16.mxu0 0
  %53 = vmatpush1.bf16.msra.mxu0 0
  %54 = vmatprep.subr.bf16.mxu0 0
  %55 = vmatpush1.bf16.msra.mxu0 0
  %56 = vmatprep.subr.bf16.mxu0 0
  %57 = vmatpush1.bf16.msra.mxu0 0
  %58 = vmatprep.subr.bf16.mxu0 0
  %59 = vmatpush1.bf16.msra.mxu0 0
  %60 = vmatprep.subr.bf16.mxu0 0
  %61 = vmatpush1.bf16.msra.mxu0 0
  %62 = vmatprep.subr.bf16.mxu0 0
  %63 = vmatpush1.bf16.msra.mxu0 0
  %64 = vmatprep.subr.bf16.mxu0 0
  %65 = vmatpush1.bf16.msra.mxu0 0
  %66 = vmatprep.subr.bf16.mxu0 0
  %67 = vmatpush1.bf16.msra.mxu0 0
  %68 = vmatprep.subr.bf16.mxu0 0
  %69 = vmatpush1.bf16.msra.mxu0 0
  %70 = vmatprep.subr.bf16.mxu0 0
  %71 = vmatpush1.bf16.msra.mxu0 0
  %72 = vmatprep.subr.bf16.mxu0 0
  %73 = vmatpush1.bf16.msra.mxu0 0
  %74 = vmatprep.mubr.bf16.mxu0 0
  %75 = vmatmul.mubr.bf16.gmra.mrb[0].mxu0 %v40
  %v76 = vpop.f32.mrb[0].mxu0
  %v77 = vadd.f32 %v30, %v76
  %v78 = vpop.f32.mrb[0].mxu0
  %v79 = vpop.f32.mrb[0].mxu0
  %v80 = vpop.f32.mrb[0].mxu0
  %81 = vdwg.mxu0
  %v82 = vmax.f32 %v77, 0.0
  %v83 = vpack.c.bf16 %v82, %v82
  %v84 = vld [vmem:[%s3] sm:$0xf]
  %v85 = vld [vmem:[%s3 + $0x4] sm:$0xf]
  %v86 = vld [vmem:[%s3 + $0x8] sm:$0xf]
  %v87 = vld [vmem:[%s3 + $0xc] sm:$0xf]
  %v88 = vld [vmem:[%s3 + $0x10] sm:$0xf]
  %v89 = vld [vmem:[%s3 + $0x14] sm:$0xf]
  %v90 = vld [vmem:[%s3 + $0x18] sm:$0xf]
  %v91 = vld [vmem:[%s3 + $0x1c] sm:$0xf]
  %v92 = vld [vmem:[%s3 + $0x20] sm:$0xf]
  %v93 = vld [vmem:[%s3 + $0x24] sm:$0xf]
  %v94 = vld [vmem:[%s3 + $0x28] sm:$0xf]
  %v95 = vld [vmem:[%s3 + $0x2c] sm:$0xf]
  %v96 = vld [vmem:[%s3 + $0x30] sm:$0xf]
  %v97 = vld [vmem:[%s3 + $0x34] sm:$0xf]
  %v98 = vld [vmem:[%s3 + $0x38] sm:$0xf]
  %v99 = vld [vmem:[%s3 + $0x3c] sm:$0xf]
  %v100 = vld [vmem:[%s4] sm:$0x1]
  %v102 = vlaneseq
  %v103 = vshrl.u32 %v102, 7
  %v104 = vsub.s32 0, %v103
  %v105 = vrot.slane %v100, %v104
  %v123 = vunpack.c.l.b16 %v84
  %v124 = vunpack.c.l.b16 %v85
  %v125 = vunpack.c.l.b16 %v86
  %v126 = vunpack.c.l.b16 %v87
  %v127 = vunpack.c.l.b16 %v88
  %v128 = vunpack.c.l.b16 %v89
  %v129 = vunpack.c.l.b16 %v90
  %v130 = vunpack.c.l.b16 %v91
  %v131 = vunpack.c.l.b16 %v92
  %v132 = vunpack.c.l.b16 %v93
  %v133 = vunpack.c.l.b16 %v94
  %v134 = vunpack.c.l.b16 %v95
  %v135 = vunpack.c.l.b16 %v96
  %v136 = vunpack.c.l.b16 %v97
  %v137 = vunpack.c.l.b16 %v98
  %v138 = vunpack.c.l.b16 %v99
  %v139 = vpack.c.b16 %v124, %v123
  %v140 = vpack.c.b16 %v126, %v125
  %v141 = vpack.c.b16 %v128, %v127
  %v142 = vpack.c.b16 %v130, %v129
  %v143 = vpack.c.b16 %v132, %v131
  %v144 = vpack.c.b16 %v134, %v133
  %v145 = vpack.c.b16 %v136, %v135
  %v146 = vpack.c.b16 %v138, %v137
  %155 = vmatprep.subr.bf16.mxu0 0
  %156 = vmatpush1.bf16.msra.mxu0 %v139
  %157 = vmatprep.subr.bf16.mxu0 0
  %158 = vmatpush1.bf16.msra.mxu0 %v140
  %159 = vmatprep.subr.bf16.mxu0 0
  %160 = vmatpush1.bf16.msra.mxu0 %v141
  %161 = vmatprep.subr.bf16.mxu0 0
  %162 = vmatpush1.bf16.msra.mxu0 %v142
  %163 = vmatprep.subr.bf16.mxu0 0
  %164 = vmatpush1.bf16.msra.mxu0 %v143
  %165 = vmatprep.subr.bf16.mxu0 0
  %166 = vmatpush1.bf16.msra.mxu0 %v144
  %167 = vmatprep.subr.bf16.mxu0 0
  %168 = vmatpush1.bf16.msra.mxu0 %v145
  %169 = vmatprep.subr.bf16.mxu0 0
  %170 = vmatpush1.bf16.msra.mxu0 %v146
  %171 = vmatprep.subr.bf16.mxu0 0
  %172 = vmatpush1.bf16.msra.mxu0 0
  %173 = vmatprep.subr.bf16.mxu0 0
  %174 = vmatpush1.bf16.msra.mxu0 0
  %175 = vmatprep.subr.bf16.mxu0 0
  %176 = vmatpush1.bf16.msra.mxu0 0
  %177 = vmatprep.subr.bf16.mxu0 0
  %178 = vmatpush1.bf16.msra.mxu0 0
  %179 = vmatprep.subr.bf16.mxu0 0
  %180 = vmatpush1.bf16.msra.mxu0 0
  %181 = vmatprep.subr.bf16.mxu0 0
  %182 = vmatpush1.bf16.msra.mxu0 0
  %183 = vmatprep.subr.bf16.mxu0 0
  %184 = vmatpush1.bf16.msra.mxu0 0
  %185 = vmatprep.subr.bf16.mxu0 0
  %186 = vmatpush1.bf16.msra.mxu0 0
  %187 = vmatprep.mubr.bf16.mxu0 0
  %188 = vmatmul.mubr.bf16.gmra.mrb[0].mxu0 %v83
  %v189 = vpop.f32.mrb[0].mxu0
  %v190 = vadd.f32 %v105, %v189
  %v191 = vpop.f32.mrb[0].mxu0
  %v192 = vpop.f32.mrb[0].mxu0
  %v193 = vpop.f32.mrb[0].mxu0
  %194 = vdwg.mxu0
  %vm195 = vcmask 31744
  %196 = vst.msk [vmem:[%s5] sm:$0xff] %vm195, %v190
  // Predicated region
  $region22: #{_net_forward_pallas.1} parent=0 // pred_check
    _
  $region23: #{_net_forward_pallas.1} parent=0 // pred_check_branch
    %198 = sbr.rel (0) target = $region25
  $region24: #{_net_forward_pallas.1} parent=0 // pred_region
    _
  $region25: #{_net_forward_pallas.1} parent=0 // pred_fallthru
    _
  // Predicated region
  $region26: #{_net_forward_pallas.1} parent=0 // pred_check
    _
  $region27: #{_net_forward_pallas.1} parent=0 // pred_check_branch
    %200 = sbr.rel (0) target = $region29
  $region28: #{_net_forward_pallas.1} parent=0 // pred_region
    _
  $region29: #{_net_forward_pallas.1} parent=0 // pred_fallthru
    _

</llo_original>
